<compile_context>
chip_gen: v7x
topology: tpu7x:2x2x1
jax: 0.10.0
libtpu: 0.0.40
codegen_flags: <defaults>
</compile_context>

<pallas_src>
import jax
import jax.numpy as jnp
from jax.experimental import pallas as pl
from jax.experimental.pallas import tpu as pltpu


def _pe_kernel(col_ref, row_ref, out_ref):
    # col_ref: (W, d2), row_ref: (Ht, d2), out_ref: (Ht, W, d_model)
    W, d2 = col_ref.shape
    Ht = row_ref.shape[0]
    col = col_ref[...]                                   # (W, d2)
    row = row_ref[...]                                   # (Ht, d2)
    # First half of the channel dim: column embedding, identical for every h.
    out_ref[:, :, :d2] = jnp.broadcast_to(col[None, :, :], (Ht, W, d2))
    # Second half: row embedding, identical for every w.
    out_ref[:, :, d2:] = jnp.broadcast_to(row[:, None, :], (Ht, W, d2))


def _choose_h_tile(H, W, d_model, itemsize):
    """Largest legal H-tile under a ~2 MiB output-block budget; prefer >= 2
    grid steps (megacore) when a reasonably sized proper divisor exists."""
    budget = 2 << 20

    def layout_ok(t):
        # Row-embedding block is (t, d2): sublane rule on 2nd-to-last dim.
        return (t % 8 == 0) or (t == H)

    divisors = [d for d in range(1, H + 1) if H % d == 0]
    fitting = [d for d in divisors
               if layout_ok(d) and d * W * d_model * itemsize <= budget]
    tile = max(fitting) if fitting else H
    # Prefer a parallel grid of >= 2 steps when the per-step block stays big.
    proper = [d for d in fitting
              if d < H and d * W * d_model * itemsize >= (8 << 10)]
    if tile == H and proper:
        tile = max(proper)
    return tile


def position_embedding_learned(x, row_embed_weight, col_embed_weight, d_model):
    """x: (B, C, H, W). Returns pe: (B, H*W, d_model)."""
    B = x.shape[0]
    H, W = x.shape[-2], x.shape[-1]
    assert d_model % 2 == 0, "d_model must be even"
    d2 = d_model // 2
    assert row_embed_weight.shape[0] >= H, "grid_size (rows) too small for H"
    assert col_embed_weight.shape[0] >= W, "grid_size (cols) too small for W"

    out_dtype = jnp.result_type(row_embed_weight.dtype, col_embed_weight.dtype)
    # Embedding lookup with arange indices == take the first W / H rows.
    col_emb = col_embed_weight[:W].astype(out_dtype)   # (W, d2)
    row_emb = row_embed_weight[:H].astype(out_dtype)   # (H, d2)

    h_tile = _choose_h_tile(H, W, d_model, jnp.dtype(out_dtype).itemsize)
    grid = (H // h_tile,)

    table = pl.pallas_call(
        _pe_kernel,
        out_shape=jax.ShapeDtypeStruct((H, W, d_model), out_dtype),
        grid=grid,
        in_specs=[
            pl.BlockSpec((W, d2), lambda h: (0, 0)),         # col table (whole)
            pl.BlockSpec((h_tile, d2), lambda h: (h, 0)),    # row tile
        ],
        out_specs=pl.BlockSpec((h_tile, W, d_model), lambda h: (h, 0, 0)),
        compiler_params=pltpu.CompilerParams(
            dimension_semantics=("parallel",)),
    )(col_emb, row_emb)

    # (H, W, d_model) -> (H*W, d_model): free metadata reshape in HBM.
    table = table.reshape(H * W, d_model)
    # Batch copies are identical: broadcast lazily (the kernel writes the
    # table exactly once; no extra HBM writeback).
    return jnp.broadcast_to(table[None], (B, H * W, d_model))


if __name__ == "__main__":
    # Small, module-consistent shapes.
    batch = 2
    channels = 4
    grid_size = 16
    d_model = 32

    key = jax.random.PRNGKey(0)
    k_row, k_col, k_x = jax.random.split(key, 3)

    # nn.init.uniform_ -> uniform [0, 1)
    row_embed_weight = jax.random.uniform(
        k_row, (grid_size, d_model // 2), dtype=jnp.float32)
    col_embed_weight = jax.random.uniform(
        k_col, (grid_size, d_model // 2), dtype=jnp.float32)

    x = jax.random.normal(
        k_x, (batch, channels, grid_size, grid_size), dtype=jnp.float32)

    pe = position_embedding_learned(x, row_embed_weight, col_embed_weight,
                                    d_model)
    pe = jax.block_until_ready(pe)

    # Pure-JAX reference check (same math as the PyTorch forward).
    H, W = x.shape[-2], x.shape[-1]
    x_emb = col_embed_weight[:W]                              # (W, d2)
    y_emb = row_embed_weight[:H]                              # (H, d2)
    ref = jnp.concatenate(
        [jnp.broadcast_to(x_emb[None, :, :], (H, W, d_model // 2)),
         jnp.broadcast_to(y_emb[:, None, :], (H, W, d_model // 2))],
        axis=-1)
    ref = jnp.broadcast_to(ref[None], (batch, H, W, d_model)).reshape(
        batch, H * W, d_model)

    assert pe.shape == (batch, grid_size * grid_size, d_model)
    assert jnp.allclose(pe, ref, atol=1e-6), "mismatch vs reference"

    print("KERNEL_OK")
</pallas_src>

<mosaic_0001>
module attributes {stable_mosaic.version = 11 : i64} {
  func.func @_pe_kernel(%arg0: i32, %arg1: memref<16x16xf32, #tpu.memory_space<vmem>>, %arg2: memref<8x16xf32, #tpu.memory_space<vmem>>, %arg3: memref<8x16x32xf32, #tpu.memory_space<vmem>>) attributes {dimension_semantics = [#tpu.dimension_semantics<parallel>], iteration_bounds = array<i64: 2>, scalar_prefetch = 0 : i64, scratch_operands = 0 : i64, tpu.core_type = #tpu.core_type<tc>, window_params = [{pipeline_mode = #tpu.pipeline_mode<synchronous>, transform_indices = @transform_0, window_bounds = array<i64: 16, 16>}, {transform_indices = @transform_1, window_bounds = array<i64: 8, 16>}, {transform_indices = @transform_2, window_bounds = array<i64: 8, 16, 32>}]} {
    %c0 = arith.constant 0 : index
    %c0_0 = arith.constant 0 : index
    %0 = vector.load %arg1[%c0, %c0_0] : memref<16x16xf32, #tpu.memory_space<vmem>>, vector<16x16xf32>
    %c0_1 = arith.constant 0 : index
    %c0_2 = arith.constant 0 : index
    %1 = vector.load %arg2[%c0_1, %c0_2] : memref<8x16xf32, #tpu.memory_space<vmem>>, vector<8x16xf32>
    %2 = vector.shape_cast %0 : vector<16x16xf32> to vector<1x16x16xf32>
    %3 = vector.shape_cast %2 : vector<1x16x16xf32> to vector<1x16x16xf32>
    %4 = vector.broadcast %3 : vector<1x16x16xf32> to vector<8x16x16xf32>
    %c0_3 = arith.constant 0 : index
    %c0_4 = arith.constant 0 : index
    %c0_5 = arith.constant 0 : index
    %5 = vector.load %arg3[%c0_3, %c0_4, %c0_5] : memref<8x16x32xf32, #tpu.memory_space<vmem>>, vector<8x16x16xf32>
    tpu.vector_store %arg3[%c0_3, %c0_4, %c0_5], %4 {strides = array<i32>} : memref<8x16x32xf32, #tpu.memory_space<vmem>>, vector<8x16x16xf32>,
    %6 = vector.shape_cast %1 : vector<8x16xf32> to vector<8x1x16xf32>
    %7 = vector.shape_cast %6 : vector<8x1x16xf32> to vector<8x1x16xf32>
    %8 = vector.broadcast %7 : vector<8x1x16xf32> to vector<8x16x16xf32>
    %c0_6 = arith.constant 0 : index
    %c0_7 = arith.constant 0 : index
    %c16 = arith.constant 16 : index
    %9 = vector.load %arg3[%c0_6, %c0_7, %c16] : memref<8x16x32xf32, #tpu.memory_space<vmem>>, vector<8x16x16xf32>
    tpu.vector_store %arg3[%c0_6, %c0_7, %c16], %8 {strides = array<i32>} : memref<8x16x32xf32, #tpu.memory_space<vmem>>, vector<8x16x16xf32>,
    return
  }
  func.func @transform_0(%arg0: i32) -> (i32, i32) {
    %c0_i32 = arith.constant 0 : i32
    %c0_i32_0 = arith.constant 0 : i32
    %c0_i32_1 = arith.constant 0 : i32
    return %c0_i32, %c0_i32_0 : i32, i32
  }
  func.func @transform_1(%arg0: i32) -> (i32, i32) {
    %c0_i32 = arith.constant 0 : i32
    %c0_i32_0 = arith.constant 0 : i32
    return %arg0, %c0_i32 : i32, i32
  }
  func.func @transform_2(%arg0: i32) -> (i32, i32, i32) {
    %c0_i32 = arith.constant 0 : i32
    %c0_i32_0 = arith.constant 0 : i32
    %c0_i32_1 = arith.constant 0 : i32
    return %arg0, %c0_i32, %c0_i32_0 : i32, i32, i32
  }
}

</mosaic_0001>

<llo_original>
// kernel: tpu_custom_call.1
$region0: #{tpu_custom_call.1}
  #allocation0 [shape = 'u32[]', space=smem, size = 0x4, offset = 0x4, fixed_abs, tag = 'smem constant byte address 0x4 - core index']
  #allocation1 [shape = 'u32[144,128]{1,0:T(1,128)}', space=vmem, size = 0x12000, scoped, tag = 'internal scratch']
  %s0 = inlined_call_operand.hbm [shape: f32[16,16], index: 0, kind: input, shape index: {}]
  %s1 = inlined_call_operand.hbm [shape: f32[16,16], index: 1, kind: input, shape index: {}]
  %s2 = inlined_call_operand.hbm [shape: f32[16,16,32], index: 2, kind: output, shape index: {}]
  %s3 = sld [smem:[#allocation0]]
  $region49: #{tpu_custom_call.1} parent=0
    _
  %s5 = ssub.s32 1, %s3
  %s6 = scalar_select 0, %s5, %s3
  $region1: #{tpu_custom_call.1} parent=0
    #allocation2 [shape = 'u8[8192]{0}', space=vmem, size = 0x2000, scoped, tag = 'input window, operand 0, single buffered']
    #allocation3 [shape = 's32[2]{0}', space=sflag, size = 0x8, scoped, tag = 'scoped memory for tpu_custom_call.1']
    #allocation4 [shape = 's32[2]{0}', space=sflag, size = 0x8, scoped, tag = 'scoped memory for tpu_custom_call.1']
    #allocation5 [shape = 'u8[8192]{0}', space=vmem, size = 0x2000, scoped, tag = 'input window, operand 1']
    #allocation6 [shape = 's32[2]{0}', space=sflag, size = 0x8, scoped, tag = 'scoped memory for tpu_custom_call.1']
    #allocation7 [shape = 'u8[131072]{0}', space=vmem, size = 0x20000, scoped, tag = 'output window, operand 0']
    %7 = vsyncpa [#allocation3], 0
    %8 = vsyncpa [#allocation6], 0
    %s9 = scalar_lea.sflag [#allocation6], 1
    %10 = vsyncpa %s9, 0
    %11 = vsyncpa [#allocation4], 0
    %s12 = scalar_lea.sflag [#allocation4], 1
    %13 = vsyncpa %s12, 0
    loop: start=0, step=1, limit=4
    $region2: #{tpu_custom_call.1} parent=1 // loop_pre_header
      _
    $region3: #{tpu_custom_call.1} parent=1 // loop_header
      %s15 = sphi 0, %s19
      %p16 = scmp.ge.s32.totalorder %s15, 4
      %s23 = sphi 0, %s23
      %s25 = sphi 0, %s23
      %s26 = sphi 0, %s25
      %s40 = sphi 0, %s26
      %s46 = sphi 0, %s48
      %s49 = sphi 0, %s46
      %s50 = sphi 0, %s49
      %s66 = sphi 0, %s50
      %s72 = sphi 0, %s74
      %s75 = sphi 0, %s72
      %s76 = sphi 0, %s75
      %s92 = sphi 0, %s76
    $region4: #{tpu_custom_call.1} parent=1 // loop_header_branch
      %18 = sbr.rel (%p16) target = $region8
    $region5: #{tpu_custom_call.1} parent=1 // loop_body
      %s20 = ssub.s32 %s15, 1
      %s21 = ssub.s32 %s15, 2
      %s22 = sadd.s32 %s15, 1
      %s24 = sadd.s32 %s23, 1
      %p27 = scmp.eq.s32.totalorder %s15, 1
      %p28 = scmp.ne.s32.totalorder %s23, %s25
      %p29 = scmp.eq.s32.totalorder %s15, 0
      %p30 = por %p28, %p29
      %p31 = scmp.ne.s32.totalorder %s23, %s25
      %p32 = scmp.eq.s32.totalorder %s20, 1
      %p33 = por %p31, %p32
      %p34 = scmp.ne.s32.totalorder %s25, %s26
      %p35 = scmp.eq.s32.totalorder %s20, 0
      %p36 = por %p34, %p35
      %p37 = scmp.ne.s32.totalorder %s25, %s26
      %p38 = scmp.eq.s32.totalorder %s21, 1
      %p39 = por %p37, %p38
      %p41 = scmp.ne.s32.totalorder %s26, %s40
      %p42 = scmp.eq.s32.totalorder %s21, 0
      %p43 = por %p41, %p42
      %s44 = ssub.s32 %s15, %s22
      %p45 = scmp.eq.s32.totalorder %s44, 0
      %s47 = sadd.s32 %s46, 1
      %s48 = scalar_select %p45, %s46, %s47
      %p51 = pneg %p45
      %p52 = scmp.eq.s32.totalorder %s15, 1
      %p53 = por %p51, %p52
      %p54 = scmp.ne.s32.totalorder %s46, %s49
      %p55 = scmp.eq.s32.totalorder %s15, 0
      %p56 = por %p54, %p55
      %p57 = scmp.ne.s32.totalorder %s46, %s49
      %p58 = scmp.eq.s32.totalorder %s20, 1
      %p59 = por %p57, %p58
      %p60 = scmp.ne.s32.totalorder %s49, %s50
      %p61 = scmp.eq.s32.totalorder %s20, 0
      %p62 = por %p60, %p61
      %p63 = scmp.ne.s32.totalorder %s49, %s50
      %p64 = scmp.eq.s32.totalorder %s21, 1
      %p65 = por %p63, %p64
      %p67 = scmp.ne.s32.totalorder %s50, %s66
      %p68 = scmp.eq.s32.totalorder %s21, 0
      %p69 = por %p67, %p68
      %s70 = ssub.s32 %s15, %s22
      %p71 = scmp.eq.s32.totalorder %s70, 0
      %s73 = sadd.s32 %s72, 1
      %s74 = scalar_select %p71, %s72, %s73
      %p77 = pneg %p71
      %p78 = scmp.eq.s32.totalorder %s15, 1
      %p79 = por %p77, %p78
      %p80 = scmp.ne.s32.totalorder %s72, %s75
      %p81 = scmp.eq.s32.totalorder %s15, 0
      %p82 = por %p80, %p81
      %p83 = scmp.ne.s32.totalorder %s72, %s75
      %p84 = scmp.eq.s32.totalorder %s20, 1
      %p85 = por %p83, %p84
      %p86 = scmp.ne.s32.totalorder %s75, %s76
      %p87 = scmp.eq.s32.totalorder %s20, 0
      %p88 = por %p86, %p87
      %p89 = scmp.ne.s32.totalorder %s75, %s76
      %p90 = scmp.eq.s32.totalorder %s21, 1
      %p91 = por %p89, %p90
      %p93 = scmp.ne.s32.totalorder %s76, %s92
      %p94 = scmp.eq.s32.totalorder %s21, 0
      %p95 = por %p93, %p94
      %p96 = scmp.le.s32.totalorder 1, %s15
      %p97 = scmp.lt.s32.totalorder %s15, 3
      %p98 = pnand %p96, %p97
      %p99 = pneg %p98
      // Predicated region
      $region9: #{tpu_custom_call.1} parent=5 // pred_check
        _
      $region10: #{tpu_custom_call.1} parent=5 // pred_check_branch
        %101 = sbr.rel (%p98) target = $region12
      $region11: #{tpu_custom_call.1} parent=5 // pred_region
        %s102 = ssub.s32 %s15, 1
        // Predicated region
        $region13: #{tpu_custom_call.1} parent=11 // pred_check
          %p103 = pneg %p36
        $region14: #{tpu_custom_call.1} parent=11 // pred_check_branch
          %105 = sbr.rel (%p103) target = $region16
        $region15: #{tpu_custom_call.1} parent=11 // pred_region
          %s107 = ssub.s32 256, 256
          %108 = vsyncadd [#allocation3], %s107
          %s109 = sshll.u32 [#allocation2], 4
          %s110 = int_to_ptr.vmem [resolvable:$true] %s109
          %115 = dma.hbm_to_vmem [thread:$0]  %s0, 256, %s110, [#allocation3], 128, 128, 8
        $region16: #{tpu_custom_call.1} parent=11 // pred_fallthru
          _
      $region12: #{tpu_custom_call.1} parent=5 // pred_fallthru
        _
      %p116 = scmp.lt.s32.totalorder %s15, 2
      // Predicated region
      $region17: #{tpu_custom_call.1} parent=5 // pred_check
        %p117 = pneg %p116
      $region18: #{tpu_custom_call.1} parent=5 // pred_check_branch
        %119 = sbr.rel (%p117) target = $region20
      $region19: #{tpu_custom_call.1} parent=5 // pred_region
        // Predicated region
        $region21: #{tpu_custom_call.1} parent=19 // pred_check
          %p120 = pneg %p56
        $region22: #{tpu_custom_call.1} parent=19 // pred_check_branch
          %122 = sbr.rel (%p120) target = $region24
        $region23: #{tpu_custom_call.1} parent=19 // pred_region
          %s123 = sand.u32 %s46, 1
          %s124 = scalar_lea.sflag [#allocation6], %s123
          %s125 = sand.u32 %s46, 1
          %s126 = smul.addr %s125, 8
          %s127 = scalar_lea.vmem [#allocation5], %s126
          %s129 = ssub.s32 128, 128
          %130 = vsyncadd %s124, %s129
          %s131 = smul.addr %s15, 128
          %s132 = scalar_lea.hbm %s1, %s131
          %s134 = sshll.u32 %s127, 4
          %s135 = int_to_ptr.vmem [resolvable:$true] %s134
          %137 = dma.hbm_to_vmem [thread:$0]  %s132, 128, %s135, %s124
        $region24: #{tpu_custom_call.1} parent=19 // pred_fallthru
          _
      $region20: #{tpu_custom_call.1} parent=5 // pred_fallthru
        _
      %p138 = scmp.le.s32.totalorder 1, %s15
      %p139 = scmp.lt.s32.totalorder %s15, 3
      %p140 = pnand %p138, %p139
      %p141 = pneg %p140
      // Predicated region
      $region25: #{tpu_custom_call.1} parent=5 // pred_check
        _
      $region26: #{tpu_custom_call.1} parent=5 // pred_check_branch
        %143 = sbr.rel (%p140) target = $region28
      $region27: #{tpu_custom_call.1} parent=5 // pred_region
        %s144 = ssub.s32 %s15, 1
        // Predicated region
        $region29: #{tpu_custom_call.1} parent=27 // pred_check
          %p145 = pneg %p36
        $region30: #{tpu_custom_call.1} parent=27 // pred_check_branch
          %147 = sbr.rel (%p145) target = $region32
        $region31: #{tpu_custom_call.1} parent=27 // pred_region
          %148 = dma.done [#allocation3], 256
        $region32: #{tpu_custom_call.1} parent=27 // pred_fallthru
          _
        %s149 = sand.u32 %s49, 1
        %s150 = scalar_lea.sflag [#allocation6], %s149
        %s151 = sand.u32 %s49, 1
        %s152 = smul.addr %s151, 8
        %s153 = scalar_lea.vmem [#allocation5], %s152
        // Predicated region
        $region33: #{tpu_custom_call.1} parent=27 // pred_check
          %p154 = pneg %p62
        $region34: #{tpu_custom_call.1} parent=27 // pred_check_branch
          %156 = sbr.rel (%p154) target = $region36
        $region35: #{tpu_custom_call.1} parent=27 // pred_region
          %157 = dma.done %s150, 128
        $region36: #{tpu_custom_call.1} parent=27 // pred_fallthru
          _
        %p158 = pneg %p36
        %p159 = pneg %p33
        %s160 = sand.u32 %s49, 1
        %s161 = scalar_lea.sflag [#allocation6], %s160
        %s162 = sand.u32 %s49, 1
        %s163 = smul.addr %s162, 8
        %s164 = scalar_lea.vmem [#allocation5], %s163
        %p165 = pneg %p62
        %p166 = pneg %p59
        %p167 = pneg %p88
        %p168 = pneg %p85
        %s169 = sand.u32 %s75, 1
        %s170 = scalar_lea.sflag [#allocation4], %s169
        %s171 = sand.u32 %s75, 1
        %s172 = smul.addr %s171, 128
        %s173 = scalar_lea.vmem [#allocation7], %s172
        %s174 = smul.u32 8, %s20
        %v175 = vld [vmem:[#allocation2] sm:$0xff]
        %v176 = vld [vmem:[#allocation2 + $0x8] sm:$0xff]
        %v177 = vld [vmem:[%s153] sm:$0xff]
        %vm178 = vcmask 130048
        %179 = vst.msk [vmem:[%s173] sm:$0xff] %vm178, %v175
        %180 = vst.msk [vmem:[%s173 + $0x8] sm:$0xff] %vm178, %v176
        %181 = vst.msk [vmem:[%s173 + $0x10] sm:$0xff] %vm178, %v175
        %182 = vst.msk [vmem:[%s173 + $0x18] sm:$0xff] %vm178, %v176
        %183 = vst.msk [vmem:[%s173 + $0x20] sm:$0xff] %vm178, %v175
        %184 = vst.msk [vmem:[%s173 + $0x28] sm:$0xff] %vm178, %v176
        %185 = vst.msk [vmem:[%s173 + $0x30] sm:$0xff] %vm178, %v175
        %186 = vst.msk [vmem:[%s173 + $0x38] sm:$0xff] %vm178, %v176
        %187 = vst.msk [vmem:[%s173 + $0x40] sm:$0xff] %vm178, %v175
        %188 = vst.msk [vmem:[%s173 + $0x48] sm:$0xff] %vm178, %v176
        %189 = vst.msk [vmem:[%s173 + $0x50] sm:$0xff] %vm178, %v175
        %190 = vst.msk [vmem:[%s173 + $0x58] sm:$0xff] %vm178, %v176
        %191 = vst.msk [vmem:[%s173 + $0x60] sm:$0xff] %vm178, %v175
        %192 = vst.msk [vmem:[%s173 + $0x68] sm:$0xff] %vm178, %v176
        %193 = vst.msk [vmem:[%s173 + $0x70] sm:$0xff] %vm178, %v175
        %194 = vst.msk [vmem:[%s173 + $0x78] sm:$0xff] %vm178, %v176
        %v196 = vcombine.high %v177, %v177
        %v198 = vunpack.c.l.s4 1966171168
        %v199 = vunpack.c.0.s8 %v198
        %v200 = vlaneseq
        %v201 = vshrl.u32 %v200, 7
        %v202 = vsub.s32 %v199, %v201
        %v203 = vrot.slane %v177, %v202
        %v205 = vunpack.c.l.s4 1966171168
        %v206 = vunpack.c.0.s8 %v205
        %v207 = vlaneseq
        %v208 = vshrl.u32 %v207, 7
        %v209 = vsub.s32 %v206, %v208
        %v210 = vrot.slane %v196, %v209
        %v211 = vcombine.high %v203, %v203
        %v212 = vcombine.high %v210, %v210
        %v214 = vunpack.c.l.s4 1966171168
        %v215 = vunpack.c.0.s8 %v214
        %v216 = vlaneseq
        %v217 = vshrl.u32 %v216, 7
        %v218 = vsub.s32 %v215, %v217
        %v219 = vrot.slane %v203, %v218
        %v221 = vunpack.c.l.s4 1966171168
        %v222 = vunpack.c.0.s8 %v221
        %v223 = vlaneseq
        %v224 = vshrl.u32 %v223, 7
        %v225 = vsub.s32 %v222, %v224
        %v226 = vrot.slane %v210, %v225
        %v228 = vunpack.c.l.s4 1966171168
        %v229 = vunpack.c.0.s8 %v228
        %v230 = vlaneseq
        %v231 = vshrl.u32 %v230, 7
        %v232 = vsub.s32 %v229, %v231
        %v233 = vrot.slane %v211, %v232
        %v235 = vunpack.c.l.s4 1966171168
        %v236 = vunpack.c.0.s8 %v235
        %v237 = vlaneseq
        %v238 = vshrl.u32 %v237, 7
        %v239 = vsub.s32 %v236, %v238
        %v240 = vrot.slane %v212, %v239
        %v241 = vcombine.high %v219, %v219
        %v242 = vcombine.high %v226, %v226
        %v243 = vcombine.high %v233, %v233
        %v244 = vcombine.high %v240, %v240
        %v245 = vlaneseq
        %v246 = vshrl.u32 %v245, 7
        %v247 = vsub.s32 0, %v246
        %v248 = vrot.slane %v219, %v247
        %v249 = vlaneseq
        %v250 = vshrl.u32 %v249, 7
        %v251 = vsub.s32 0, %v250
        %v252 = vrot.slane %v233, %v251
        %v253 = vlaneseq
        %v254 = vshrl.u32 %v253, 7
        %v255 = vsub.s32 0, %v254
        %v256 = vrot.slane %v241, %v255
        %v257 = vlaneseq
        %v258 = vshrl.u32 %v257, 7
        %v259 = vsub.s32 0, %v258
        %v260 = vrot.slane %v243, %v259
        %v261 = vlaneseq
        %v262 = vshrl.u32 %v261, 7
        %v263 = vsub.s32 0, %v262
        %v264 = vrot.slane %v226, %v263
        %v265 = vlaneseq
        %v266 = vshrl.u32 %v265, 7
        %v267 = vsub.s32 0, %v266
        %v268 = vrot.slane %v240, %v267
        %v269 = vlaneseq
        %v270 = vshrl.u32 %v269, 7
        %v271 = vsub.s32 0, %v270
        %v272 = vrot.slane %v242, %v271
        %v273 = vlaneseq
        %v274 = vshrl.u32 %v273, 7
        %v275 = vsub.s32 0, %v274
        %v276 = vrot.slane %v244, %v275
        %277 = vrot.lane.b32.xlu0 %v248, 16
        %v278 = vpop.permute.xlu0 %277
        %279 = vrot.lane.b32.xlu0 %v252, 16
        %v280 = vpop.permute.xlu0 %279
        %281 = vrot.lane.b32.xlu0 %v256, 16
        %v282 = vpop.permute.xlu0 %281
        %283 = vrot.lane.b32.xlu0 %v260, 16
        %v284 = vpop.permute.xlu0 %283
        %285 = vrot.lane.b32.xlu0 %v264, 16
        %v286 = vpop.permute.xlu0 %285
        %287 = vrot.lane.b32.xlu0 %v268, 16
        %v288 = vpop.permute.xlu0 %287
        %289 = vrot.lane.b32.xlu0 %v272, 16
        %v290 = vpop.permute.xlu0 %289
        %291 = vrot.lane.b32.xlu0 %v276, 16
        %v292 = vpop.permute.xlu0 %291
        %vm301 = vcmask 261248
        %302 = vst.msk [vmem:[%s173] sm:$0xff] %vm301, %v278
        %303 = vst.msk [vmem:[%s173 + $0x8] sm:$0xff] %vm301, %v278
        %304 = vst.msk [vmem:[%s173 + $0x10] sm:$0xff] %vm301, %v280
        %305 = vst.msk [vmem:[%s173 + $0x18] sm:$0xff] %vm301, %v280
        %306 = vst.msk [vmem:[%s173 + $0x20] sm:$0xff] %vm301, %v282
        %307 = vst.msk [vmem:[%s173 + $0x28] sm:$0xff] %vm301, %v282
        %308 = vst.msk [vmem:[%s173 + $0x30] sm:$0xff] %vm301, %v284
        %309 = vst.msk [vmem:[%s173 + $0x38] sm:$0xff] %vm301, %v284
        %310 = vst.msk [vmem:[%s173 + $0x40] sm:$0xff] %vm301, %v286
        %311 = vst.msk [vmem:[%s173 + $0x48] sm:$0xff] %vm301, %v286
        %312 = vst.msk [vmem:[%s173 + $0x50] sm:$0xff] %vm301, %v288
        %313 = vst.msk [vmem:[%s173 + $0x58] sm:$0xff] %vm301, %v288
        %314 = vst.msk [vmem:[%s173 + $0x60] sm:$0xff] %vm301, %v290
        %315 = vst.msk [vmem:[%s173 + $0x68] sm:$0xff] %vm301, %v290
        %316 = vst.msk [vmem:[%s173 + $0x70] sm:$0xff] %vm301, %v292
        %317 = vst.msk [vmem:[%s173 + $0x78] sm:$0xff] %vm301, %v292
        %s318 = sand.u32 %s75, 1
        %s319 = scalar_lea.sflag [#allocation4], %s318
        %s320 = sand.u32 %s75, 1
        %s321 = smul.addr %s320, 128
        %s322 = scalar_lea.vmem [#allocation7], %s321
        // Predicated region
        $region37: #{tpu_custom_call.1} parent=27 // pred_check
          %p323 = pneg %p85
        $region38: #{tpu_custom_call.1} parent=27 // pred_check_branch
          %325 = sbr.rel (%p323) target = $region40
        $region39: #{tpu_custom_call.1} parent=27 // pred_region
          %s326 = smul.u32 8, %s20
          %s328 = ssub.s32 2048, 2048
          %329 = vsyncadd %s319, %s328
          %s330 = smul.addr %s326, 2
          %s331 = smul.addr %s330, 128
          %s332 = scalar_lea.hbm %s2, %s331
          %s333 = sshll.u32 %s322, 4
          %s334 = int_to_ptr.vmem [resolvable:$true] %s333
          %339 = dma.vmem_to_hbm [thread:$0]  %s334, 2048, %s332, %s319, 128, 128, 8
        $region40: #{tpu_custom_call.1} parent=27 // pred_fallthru
          _
      $region28: #{tpu_custom_call.1} parent=5 // pred_fallthru
        _
      %p340 = scmp.le.s32.totalorder 2, %s15
      // Predicated region
      $region41: #{tpu_custom_call.1} parent=5 // pred_check
        %p341 = pneg %p340
      $region42: #{tpu_custom_call.1} parent=5 // pred_check_branch
        %343 = sbr.rel (%p341) target = $region44
      $region43: #{tpu_custom_call.1} parent=5 // pred_region
        %s344 = ssub.s32 %s15, 2
        // Predicated region
        $region45: #{tpu_custom_call.1} parent=43 // pred_check
          %p345 = pneg %p91
        $region46: #{tpu_custom_call.1} parent=43 // pred_check_branch
          %347 = sbr.rel (%p345) target = $region48
        $region47: #{tpu_custom_call.1} parent=43 // pred_region
          %s348 = sand.u32 %s76, 1
          %s349 = scalar_lea.sflag [#allocation4], %s348
          %s350 = sand.u32 %s76, 1
          %s351 = smul.addr %s350, 128
          %s352 = scalar_lea.vmem [#allocation7], %s351
          %353 = dma.done %s349, 2048
        $region48: #{tpu_custom_call.1} parent=43 // pred_fallthru
          _
      $region44: #{tpu_custom_call.1} parent=5 // pred_fallthru
        _
    $region6: #{tpu_custom_call.1} parent=1 // loop_footer
      %s19 = sadd.s32 1, %s15
    $region7: #{tpu_custom_call.1} parent=1 // loop_footer_branch
      %14 = sbr.rel target = $region3
    $region8: #{tpu_custom_call.1} parent=1 // loop_exit
      _
    %354 = vsyncpa [#allocation3], 1
    %s355 = scalar_lea.sflag [#allocation3], 1
    %356 = vsyncpa %s355, 1
    %357 = vsyncpa [#allocation6], 1
    %s358 = scalar_lea.sflag [#allocation6], 1
    %359 = vsyncpa %s358, 1
    %360 = vsyncpa [#allocation4], 1
    %s361 = scalar_lea.sflag [#allocation4], 1
    %362 = vsyncpa %s361, 1

</llo_original>
